<compile_context>
chip_gen: v7x
topology: tpu7x:2x2x1
jax: 0.10.0
libtpu: 0.0.40
codegen_flags: <defaults>
</compile_context>

<pallas_src>
import functools

import jax
import jax.numpy as jnp
from jax.experimental import pallas as pl
from jax.experimental.pallas import tpu as pltpu


def _round_up(x, m):
    return ((x + m - 1) // m) * m


def _dropout_threshold(p):
    # keep an element iff its uint32 draw >= threshold  =>  P(keep) = 1 - p
    return min(int(round(float(p) * 4294967296.0)), 4294967295)


def _generator_kernel(*refs, apply_dropout, keep_thresh, inv_keep, v_tile):
    """Grid = (row_tiles, vocab_tiles).

    Each (i, j) step multiplies a (TM, D) row tile by a (D, TN) weight tile.
    The (TM, V) output block is resident across the inner vocab axis; raw
    logits are written per vocab tile, and running max / sum-exp scratch
    produce the log-sum-exp used to normalize on the last vocab step.
    """
    if apply_dropout:
        x_ref, bits_ref, w_ref, b_ref, o_ref, m_ref, l_ref = refs
    else:
        x_ref, w_ref, b_ref, o_ref, m_ref, l_ref = refs
        bits_ref = None

    j = pl.program_id(1)
    num_v = pl.num_programs(1)

    x = x_ref[...]
    if apply_dropout:
        # Inverted dropout via integer threshold on raw uint32 bits.
        keep = bits_ref[...] >= jnp.uint32(keep_thresh)
        x = jnp.where(keep, x * jnp.asarray(inv_keep, x.dtype), jnp.zeros_like(x))

    # MXU matmul in native input dtype, f32 accumulation.
    logits = jnp.dot(x, w_ref[...], preferred_element_type=jnp.float32)
    logits = logits + b_ref[...].astype(jnp.float32)

    @pl.when(j == 0)
    def _():
        m_ref[...] = jnp.full(m_ref.shape, -jnp.inf, dtype=jnp.float32)
        l_ref[...] = jnp.zeros(l_ref.shape, dtype=jnp.float32)

    # Online max / sum-exp across vocab tiles.
    m_prev = m_ref[...]
    m_new = jnp.maximum(m_prev, jnp.max(logits, axis=-1, keepdims=True))
    l_ref[...] = (l_ref[...] * jnp.exp(m_prev - m_new)
                  + jnp.sum(jnp.exp(logits - m_new), axis=-1, keepdims=True))
    m_ref[...] = m_new

    # Stash raw logits into this vocab tile's slice of the resident output block.
    col = pl.multiple_of(j * v_tile, v_tile)
    o_ref[:, pl.ds(col, v_tile)] = logits.astype(o_ref.dtype)

    @pl.when(j == num_v - 1)
    def _():
        lse = m_ref[...] + jnp.log(l_ref[...])
        o_ref[...] = (o_ref[...].astype(jnp.float32) - lse).astype(o_ref.dtype)


def generator_forward(x, weight, bias, *, dropout_p=0.5, training=False,
                      rng_key=None, row_tile=256, vocab_tile=512,
                      out_dtype=jnp.float32):
    """log_softmax(Linear(Dropout(x)), axis=-1).

    x: (batch, seq, D); weight: (D, V) (transposed vs nn.Linear's (V, D));
    bias: (V,).  Returns (batch, seq, V) log-probabilities.
    """
    batch, seq, d = x.shape
    dv, v = weight.shape
    assert dv == d and bias.shape == (v,)
    n = batch * seq

    # Row tiling: big tiles keep the MXU fed; pad the tail rather than shrink.
    tm = _round_up(min(int(row_tile), _round_up(n, 8)), 8)
    n_pad = _round_up(n, tm)

    x2 = x.reshape(n, d)
    if n_pad != n:
        x2 = jnp.pad(x2, ((0, n_pad - n), (0, 0)))

    # Vocab tiling: stream (D, TN) weight tiles; fall back to a single tile if
    # V is not a multiple of the requested tile.
    vt = int(vocab_tile)
    tn = vt if (v % vt == 0) else v
    num_v = v // tn

    b2 = bias.reshape(1, v)

    p = float(dropout_p)
    apply_dropout = bool(training) and p > 0.0
    if apply_dropout and p >= 1.0:
        # torch.nn.Dropout(p=1.0) zeroes its input entirely.
        x2 = jnp.zeros_like(x2)
        apply_dropout = False

    inputs = [x2]
    in_specs = [pl.BlockSpec((tm, d), lambda i, j: (i, 0))]
    keep_thresh = 0
    inv_keep = 1.0
    if apply_dropout:
        if rng_key is None:
            rng_key = jax.random.PRNGKey(0)
        bits = jax.random.bits(rng_key, (n_pad, d), dtype=jnp.uint32)
        inputs.append(bits)
        in_specs.append(pl.BlockSpec((tm, d), lambda i, j: (i, 0)))
        keep_thresh = _dropout_threshold(p)
        inv_keep = 1.0 / (1.0 - p)
    inputs += [weight, b2]
    in_specs += [pl.BlockSpec((d, tn), lambda i, j: (0, j)),
                 pl.BlockSpec((1, tn), lambda i, j: (0, j))]

    out_spec = pl.BlockSpec((tm, v), lambda i, j: (i, 0))
    out_bytes = jnp.dtype(out_dtype).itemsize

    # Scoped-VMEM budget: double-buffered input tiles + resident output + scratch.
    est = (2 * tm * d * x2.dtype.itemsize
           + 2 * d * tn * weight.dtype.itemsize
           + 2 * tn * bias.dtype.itemsize
           + 2 * tm * v * out_bytes
           + (2 * tm * d * 4 if apply_dropout else 0)
           + 4 * tm * 4)
    vmem_limit = int(min(max(2 * est, 32 * 1024 * 1024), 64 * 1024 * 1024))

    cost = pl.CostEstimate(
        flops=2 * n_pad * d * v,
        transcendentals=n_pad * v,
        bytes_accessed=(n_pad * d * x2.dtype.itemsize
                        + d * v * weight.dtype.itemsize
                        + v * bias.dtype.itemsize
                        + n_pad * v * out_bytes
                        + (n_pad * d * 4 if apply_dropout else 0)),
    )

    kernel = functools.partial(
        _generator_kernel,
        apply_dropout=apply_dropout,
        keep_thresh=keep_thresh,
        inv_keep=inv_keep,
        v_tile=tn,
    )

    out = pl.pallas_call(
        kernel,
        out_shape=jax.ShapeDtypeStruct((n_pad, v), out_dtype),
        grid=(n_pad // tm, num_v),
        in_specs=in_specs,
        out_specs=out_spec,
        scratch_shapes=[pltpu.VMEM((tm, 1), jnp.float32),   # running max
                        pltpu.VMEM((tm, 1), jnp.float32)],  # running sum-exp
        compiler_params=pltpu.CompilerParams(
            # Row tiles are independent -> parallel (2 TCs on v7x);
            # the vocab axis carries the online-softmax state -> arbitrary.
            dimension_semantics=("parallel", "arbitrary"),
            vmem_limit_bytes=vmem_limit),
        cost_estimate=cost,
    )(*inputs)

    return out[:n].reshape(batch, seq, v)


if __name__ == "__main__":
    key = jax.random.PRNGKey(0)
    k_x, k_w, k_b, k_x2, k_w2, k_b2, k_drop = jax.random.split(key, 7)

    # --- Test 1: eval mode, single vocab tile --------------------------------
    batch, seq, d, v = 2, 8, 32, 128
    x = jax.random.normal(k_x, (batch, seq, d), dtype=jnp.float32)
    bound = 1.0 / (d ** 0.5)
    w = jax.random.uniform(k_w, (d, v), jnp.float32, -bound, bound)
    b = jax.random.uniform(k_b, (v,), jnp.float32, -bound, bound)

    out = generator_forward(x, w, b, dropout_p=0.5, training=False)
    out = jax.block_until_ready(out)
    ref = jax.nn.log_softmax(x @ w + b, axis=-1)
    assert out.shape == (batch, seq, v)
    assert jnp.allclose(out, ref, atol=1e-5, rtol=1e-5), "eval-mode mismatch"

    # --- Test 2: eval mode, multiple row + vocab tiles, padded row tail ------
    b2_, s2_, d2_, v2_ = 2, 25, 64, 384          # n = 50 rows -> padded to 64
    x_b = jax.random.normal(k_x2, (b2_, s2_, d2_), dtype=jnp.float32)
    bound2 = 1.0 / (d2_ ** 0.5)
    w_b = jax.random.uniform(k_w2, (d2_, v2_), jnp.float32, -bound2, bound2)
    bb_b = jax.random.uniform(k_b2, (v2_,), jnp.float32, -bound2, bound2)
    out2 = generator_forward(x_b, w_b, bb_b, training=False,
                             row_tile=16, vocab_tile=128)
    out2 = jax.block_until_ready(out2)
    ref2 = jax.nn.log_softmax(x_b @ w_b + bb_b, axis=-1)
    assert jnp.allclose(out2, ref2, atol=1e-4, rtol=1e-4), "tiled mismatch"

    # --- Test 3: training mode (fused dropout), exact reference --------------
    p = 0.3
    out3 = generator_forward(x, w, b, dropout_p=p, training=True, rng_key=k_drop)
    out3 = jax.block_until_ready(out3)
    n_rows = batch * seq                          # n_pad == n for these shapes
    bits = jax.random.bits(k_drop, (n_rows, d), dtype=jnp.uint32)
    keep = (bits >= jnp.uint32(_dropout_threshold(p))).astype(jnp.float32)
    x_drop = x * keep.reshape(batch, seq, d) / (1.0 - p)
    ref3 = jax.nn.log_softmax(x_drop @ w + b, axis=-1)
    assert jnp.allclose(out3, ref3, atol=1e-4, rtol=1e-4), "training mismatch"
    assert jnp.allclose(jnp.sum(jnp.exp(out3), axis=-1), 1.0, atol=1e-4)

    print("KERNEL_OK")
</pallas_src>

<mosaic_0001>
module attributes {stable_mosaic.version = 11 : i64} {
  func.func @_generator_kernel(%arg0: i32, %arg1: i32, %arg2: memref<16x32xf32, #tpu.memory_space<vmem>>, %arg3: memref<32x128xf32, #tpu.memory_space<vmem>>, %arg4: memref<1x128xf32, #tpu.memory_space<vmem>>, %arg5: memref<16x128xf32, #tpu.memory_space<vmem>>, %arg6: memref<16x1xf32, #tpu.memory_space<vmem>>, %arg7: memref<16x1xf32, #tpu.memory_space<vmem>>) attributes {dimension_semantics = [#tpu.dimension_semantics<parallel>, #tpu.dimension_semantics<arbitrary>], iteration_bounds = array<i64: 1, 1>, scalar_prefetch = 0 : i64, scratch_operands = 2 : i64, tpu.core_type = #tpu.core_type<tc>, window_params = [{transform_indices = @transform_0, window_bounds = array<i64: 16, 32>}, {transform_indices = @transform_1, window_bounds = array<i64: 32, 128>}, {transform_indices = @transform_2, window_bounds = array<i64: 1, 128>}, {transform_indices = @transform_3, window_bounds = array<i64: 16, 128>}]} {
    %c0 = arith.constant 0 : index
    %c0_0 = arith.constant 0 : index
    %0 = vector.load %arg2[%c0, %c0_0] : memref<16x32xf32, #tpu.memory_space<vmem>>, vector<16x32xf32>
    %c0_1 = arith.constant 0 : index
    %c0_2 = arith.constant 0 : index
    %1 = vector.load %arg3[%c0_1, %c0_2] : memref<32x128xf32, #tpu.memory_space<vmem>>, vector<32x128xf32>
    %cst = arith.constant dense<0.000000e+00> : vector<16x128xf32>
    %2 = tpu.matmul %0, %1, %cst {dimension_numbers = #tpu.dot_dimension_numbers<[1], [0], [0], [1], [0, 0, 1, 1], [], []>} : vector<16x32xf32>, vector<32x128xf32>, vector<16x128xf32> -> vector<16x128xf32>
    %c0_3 = arith.constant 0 : index
    %c0_4 = arith.constant 0 : index
    %3 = vector.load %arg4[%c0_3, %c0_4] : memref<1x128xf32, #tpu.memory_space<vmem>>, vector<1x128xf32>
    %4 = vector.broadcast %3 : vector<1x128xf32> to vector<16x128xf32>
    %5 = arith.addf %2, %4 : vector<16x128xf32>
    %c0_i32 = arith.constant 0 : i32
    %6 = arith.cmpi eq, %arg1, %c0_i32 : i32
    %7 = arith.extui %6 : i1 to i32
    %c0_i32_5 = arith.constant 0 : i32
    %8 = arith.cmpi ne, %7, %c0_i32_5 : i32
    scf.if %8 {
      %cst_19 = arith.constant 0xFF800000 : f32
      %32 = vector.broadcast %cst_19 : f32 to vector<16x1xf32>
      %c0_20 = arith.constant 0 : index
      %c0_21 = arith.constant 0 : index
      %33 = vector.load %arg6[%c0_20, %c0_21] : memref<16x1xf32, #tpu.memory_space<vmem>>, vector<16x1xf32>
      tpu.vector_store %arg6[%c0_20, %c0_21], %32 {strides = array<i32>} : memref<16x1xf32, #tpu.memory_space<vmem>>, vector<16x1xf32>,
      %cst_22 = arith.constant 0.000000e+00 : f32
      %34 = vector.broadcast %cst_22 : f32 to vector<16x1xf32>
      %c0_23 = arith.constant 0 : index
      %c0_24 = arith.constant 0 : index
      %35 = vector.load %arg7[%c0_23, %c0_24] : memref<16x1xf32, #tpu.memory_space<vmem>>, vector<16x1xf32>
      tpu.vector_store %arg7[%c0_23, %c0_24], %34 {strides = array<i32>} : memref<16x1xf32, #tpu.memory_space<vmem>>, vector<16x1xf32>,
    } else {
    }
    %c0_6 = arith.constant 0 : index
    %c0_7 = arith.constant 0 : index
    %9 = vector.load %arg6[%c0_6, %c0_7] : memref<16x1xf32, #tpu.memory_space<vmem>>, vector<16x1xf32>
    %cst_8 = arith.constant dense<0xFF800000> : vector<16xf32>
    %10 = vector.multi_reduction <maximumf>, %5, %cst_8 [1] : vector<16x128xf32> to vector<16xf32>
    %11 = vector.shape_cast %10 : vector<16xf32> to vector<16x1xf32>
    %12 = arith.maximumf %9, %11 : vector<16x1xf32>
    %c0_9 = arith.constant 0 : index
    %c0_10 = arith.constant 0 : index
    %13 = vector.load %arg7[%c0_9, %c0_10] : memref<16x1xf32, #tpu.memory_space<vmem>>, vector<16x1xf32>
    %14 = arith.subf %9, %12 : vector<16x1xf32>
    %15 = math.exp %14 : vector<16x1xf32>
    %16 = arith.mulf %13, %15 : vector<16x1xf32>
    %17 = vector.broadcast %12 : vector<16x1xf32> to vector<16x128xf32>
    %18 = arith.subf %5, %17 : vector<16x128xf32>
    %19 = math.exp %18 : vector<16x128xf32>
    %cst_11 = arith.constant dense<0.000000e+00> : vector<16xf32>
    %20 = vector.multi_reduction <add>, %19, %cst_11 [1] : vector<16x128xf32> to vector<16xf32>
    %21 = vector.shape_cast %20 : vector<16xf32> to vector<16x1xf32>
    %22 = arith.addf %16, %21 : vector<16x1xf32>
    %c0_12 = arith.constant 0 : index
    %c0_13 = arith.constant 0 : index
    %23 = vector.load %arg7[%c0_12, %c0_13] : memref<16x1xf32, #tpu.memory_space<vmem>>, vector<16x1xf32>
    tpu.vector_store %arg7[%c0_12, %c0_13], %22 {strides = array<i32>} : memref<16x1xf32, #tpu.memory_space<vmem>>, vector<16x1xf32>,
    %c0_14 = arith.constant 0 : index
    %c0_15 = arith.constant 0 : index
    %24 = vector.load %arg6[%c0_14, %c0_15] : memref<16x1xf32, #tpu.memory_space<vmem>>, vector<16x1xf32>
    tpu.vector_store %arg6[%c0_14, %c0_15], %12 {strides = array<i32>} : memref<16x1xf32, #tpu.memory_space<vmem>>, vector<16x1xf32>,
    %c128_i32 = arith.constant 128 : i32
    %25 = arith.muli %arg1, %c128_i32 : i32
    %26 = tpu.assume_multiple %25, 128 : i32
    %c0_16 = arith.constant 0 : index
    %27 = arith.index_cast %26 : i32 to index
    %28 = vector.load %arg5[%c0_16, %27] : memref<16x128xf32, #tpu.memory_space<vmem>>, vector<16x128xf32>
    tpu.vector_store %arg5[%c0_16, %27], %5 {strides = array<i32>} : memref<16x128xf32, #tpu.memory_space<vmem>>, vector<16x128xf32>,
    %c0_i32_17 = arith.constant 0 : i32
    %29 = arith.cmpi eq, %arg1, %c0_i32_17 : i32
    %30 = arith.extui %29 : i1 to i32
    %c0_i32_18 = arith.constant 0 : i32
    %31 = arith.cmpi ne, %30, %c0_i32_18 : i32
    scf.if %31 {
      %c0_19 = arith.constant 0 : index
      %c0_20 = arith.constant 0 : index
      %32 = vector.load %arg6[%c0_19, %c0_20] : memref<16x1xf32, #tpu.memory_space<vmem>>, vector<16x1xf32>
      %c0_21 = arith.constant 0 : index
      %c0_22 = arith.constant 0 : index
      %33 = vector.load %arg7[%c0_21, %c0_22] : memref<16x1xf32, #tpu.memory_space<vmem>>, vector<16x1xf32>
      %34 = math.log %33 : vector<16x1xf32>
      %35 = arith.addf %32, %34 : vector<16x1xf32>
      %c0_23 = arith.constant 0 : index
      %c0_24 = arith.constant 0 : index
      %36 = vector.load %arg5[%c0_23, %c0_24] : memref<16x128xf32, #tpu.memory_space<vmem>>, vector<16x128xf32>
      %37 = vector.broadcast %35 : vector<16x1xf32> to vector<16x128xf32>
      %38 = arith.subf %36, %37 : vector<16x128xf32>
      %c0_25 = arith.constant 0 : index
      %c0_26 = arith.constant 0 : index
      %39 = vector.load %arg5[%c0_25, %c0_26] : memref<16x128xf32, #tpu.memory_space<vmem>>, vector<16x128xf32>
      tpu.vector_store %arg5[%c0_25, %c0_26], %38 {strides = array<i32>} : memref<16x128xf32, #tpu.memory_space<vmem>>, vector<16x128xf32>,
    } else {
    }
    return
  }
  func.func @transform_0(%arg0: i32, %arg1: i32) -> (i32, i32) {
    %c0_i32 = arith.constant 0 : i32
    %c0_i32_0 = arith.constant 0 : i32
    return %arg0, %c0_i32 : i32, i32
  }
  func.func @transform_1(%arg0: i32, %arg1: i32) -> (i32, i32) {
    %c0_i32 = arith.constant 0 : i32
    %c0_i32_0 = arith.constant 0 : i32
    return %c0_i32, %arg1 : i32, i32
  }
  func.func @transform_2(%arg0: i32, %arg1: i32) -> (i32, i32) {
    %c0_i32 = arith.constant 0 : i32
    %c0_i32_0 = arith.constant 0 : i32
    return %c0_i32, %arg1 : i32, i32
  }
  func.func @transform_3(%arg0: i32, %arg1: i32) -> (i32, i32) {
    %c0_i32 = arith.constant 0 : i32
    %c0_i32_0 = arith.constant 0 : i32
    return %arg0, %c0_i32 : i32, i32
  }
}

</mosaic_0001>

<llo_original>
// kernel: tpu_custom_call.1
$region0: #{tpu_custom_call.1}
  #allocation0 [shape = 'u32[]', space=smem, size = 0x4, offset = 0x4, fixed_abs, tag = 'smem constant byte address 0x4 - core index']
  #allocation1 [shape = 'u32[144,128]{1,0:T(1,128)}', space=vmem, size = 0x12000, scoped, tag = 'internal scratch']
  #allocation2 [shape = 'f32[16,1]{1,0:T(8,128)}', space=vmem, size = 0x2000, scoped, tag = 'scratch operand']
  #allocation3 [shape = 'f32[16,1]{1,0:T(8,128)}', space=vmem, size = 0x2000, scoped, tag = 'scratch operand']
  %s0 = inlined_call_operand.hbm [shape: f32[16,32], index: 0, kind: input, shape index: {}]
  %s1 = inlined_call_operand.hbm [shape: f32[32,128], index: 1, kind: input, shape index: {}]
  %s2 = inlined_call_operand.vmem [shape: f32[1,128], index: 2, kind: input, shape index: {}]
  %s3 = inlined_call_operand.hbm [shape: f32[16,128], index: 3, kind: output, shape index: {}]
  %s4 = sld [smem:[#allocation0]]
  $region38: #{tpu_custom_call.1} parent=0
    _
  %s6 = ssub.s32 1, %s4
  %s7 = scalar_select 0, %s6, %s4
  $region1: #{tpu_custom_call.1} parent=0
    #allocation4 [shape = 'u8[8192]{0}', space=vmem, size = 0x2000, scoped, tag = 'input window, operand 0, single buffered']
    #allocation5 [shape = 's32[1]{0}', space=sflag, size = 0x4, scoped, tag = 'scoped memory for tpu_custom_call.1']
    #allocation6 [shape = 's32[1]{0}', space=sflag, size = 0x4, scoped, tag = 'scoped memory for tpu_custom_call.1']
    #allocation7 [shape = 'u8[16384]{0}', space=vmem, size = 0x4000, scoped, tag = 'input window, operand 1, single buffered']
    #allocation8 [shape = 's32[1]{0}', space=sflag, size = 0x4, scoped, tag = 'scoped memory for tpu_custom_call.1']
    #allocation9 [shape = 'u8[8192]{0}', space=vmem, size = 0x2000, scoped, tag = 'output window, operand 0, single buffered']
    %8 = vsyncpa [#allocation5], 0
    %9 = vsyncpa [#allocation8], 0
    %10 = vsyncpa [#allocation6], 0
    // Predicated region
    $region2: #{tpu_custom_call.1} parent=1 // pred_check
      _
    $region3: #{tpu_custom_call.1} parent=1 // pred_check_branch
      %12 = sbr.rel (0) target = $region5
    $region4: #{tpu_custom_call.1} parent=1 // pred_region
      %s14 = ssub.s32 256, 256
      %15 = vsyncadd [#allocation5], %s14
      %s16 = sshll.u32 [#allocation4], 4
      %s17 = int_to_ptr.vmem [resolvable:$true] %s16
      %22 = dma.hbm_to_vmem [thread:$0]  %s0, 256, %s17, [#allocation5], 128, 128, 8
    $region5: #{tpu_custom_call.1} parent=1 // pred_fallthru
      _
    // Predicated region
    $region6: #{tpu_custom_call.1} parent=1 // pred_check
      _
    $region7: #{tpu_custom_call.1} parent=1 // pred_check_branch
      %24 = sbr.rel (0) target = $region9
    $region8: #{tpu_custom_call.1} parent=1 // pred_region
      %s26 = ssub.s32 512, 512
      %27 = vsyncadd [#allocation8], %s26
      %s28 = sshll.u32 [#allocation7], 4
      %s29 = int_to_ptr.vmem [resolvable:$true] %s28
      %34 = dma.hbm_to_vmem [thread:$0]  %s1, 512, %s29, [#allocation8], 128, 128, 8
    $region9: #{tpu_custom_call.1} parent=1 // pred_fallthru
      _
    // Predicated region
    $region10: #{tpu_custom_call.1} parent=1 // pred_check
      _
    $region11: #{tpu_custom_call.1} parent=1 // pred_check_branch
      %36 = sbr.rel (0) target = $region13
    $region12: #{tpu_custom_call.1} parent=1 // pred_region
      _
    $region13: #{tpu_custom_call.1} parent=1 // pred_fallthru
      _
    // Predicated region
    $region14: #{tpu_custom_call.1} parent=1 // pred_check
      _
    $region15: #{tpu_custom_call.1} parent=1 // pred_check_branch
      %38 = sbr.rel (0) target = $region17
    $region16: #{tpu_custom_call.1} parent=1 // pred_region
      %39 = dma.done [#allocation5], 256
    $region17: #{tpu_custom_call.1} parent=1 // pred_fallthru
      _
    // Predicated region
    $region18: #{tpu_custom_call.1} parent=1 // pred_check
      _
    $region19: #{tpu_custom_call.1} parent=1 // pred_check_branch
      %41 = sbr.rel (0) target = $region21
    $region20: #{tpu_custom_call.1} parent=1 // pred_region
      %42 = dma.done [#allocation8], 512
    $region21: #{tpu_custom_call.1} parent=1 // pred_fallthru
      _
    %v43 = vld [vmem:[#allocation4] sm:$0xff]
    %v44 = vld [vmem:[#allocation4 + $0x8] sm:$0xff]
    %v45 = vld [vmem:[#allocation7] sm:$0xff]
    %v46 = vld [vmem:[#allocation7 + $0x8] sm:$0xff]
    %v47 = vld [vmem:[#allocation7 + $0x10] sm:$0xff]
    %v48 = vld [vmem:[#allocation7 + $0x18] sm:$0xff]
    %v49 = vld [vmem:[%s2] sm:$0x1]
    %v51 = vlaneseq
    %v52 = vshrl.u32 %v51, 7
    %v53 = vsub.s32 0, %v52
    %v54 = vrot.slane %v49, %v53
    %vm56 = vcmask 261120
    %v58 = vsel %vm56, %v43, 0
    %v61 = vsel %vm56, %v44, 0
    %63 = vmatprep.subr.mxu0 0.0
    %64 = vmatpush1.msra.mxu0 %v45
    %65 = vmatprep.subr.mxu0 0.0
    %66 = vmatpush1.msra.mxu0 %v46
    %67 = vmatprep.subr.mxu0 0.0
    %68 = vmatpush1.msra.mxu0 %v47
    %69 = vmatprep.subr.mxu0 0.0
    %70 = vmatpush1.msra.mxu0 %v48
    %71 = vmatprep.subr.mxu0 0.0
    %72 = vmatpush1.msra.mxu0 0.0
    %73 = vmatprep.subr.mxu0 0.0
    %74 = vmatpush1.msra.mxu0 0.0
    %75 = vmatprep.subr.mxu0 0.0
    %76 = vmatpush1.msra.mxu0 0.0
    %77 = vmatprep.subr.mxu0 0.0
    %78 = vmatpush1.msra.mxu0 0.0
    %79 = vmatprep.subr.mxu0 0.0
    %80 = vmatpush1.msra.mxu0 0.0
    %81 = vmatprep.subr.mxu0 0.0
    %82 = vmatpush1.msra.mxu0 0.0
    %83 = vmatprep.subr.mxu0 0.0
    %84 = vmatpush1.msra.mxu0 0.0
    %85 = vmatprep.subr.mxu0 0.0
    %86 = vmatpush1.msra.mxu0 0.0
    %87 = vmatprep.subr.mxu0 0.0
    %88 = vmatpush1.msra.mxu0 0.0
    %89 = vmatprep.subr.mxu0 0.0
    %90 = vmatpush1.msra.mxu0 0.0
    %91 = vmatprep.subr.mxu0 0.0
    %92 = vmatpush1.msra.mxu0 0.0
    %93 = vmatprep.subr.mxu0 0.0
    %94 = vmatpush1.msra.mxu0 0.0
    %95 = vmatprep.subr.mxu0 0.0
    %96 = vmatpush1.msra.mxu0 0.0
    %97 = vmatprep.subr.mxu0 0.0
    %98 = vmatpush1.msra.mxu0 0.0
    %99 = vmatprep.subr.mxu0 0.0
    %100 = vmatpush1.msra.mxu0 0.0
    %101 = vmatprep.subr.mxu0 0.0
    %102 = vmatpush1.msra.mxu0 0.0
    %103 = vmatprep.subr.mxu0 0.0
    %104 = vmatpush1.msra.mxu0 0.0
    %105 = vmatprep.subr.mxu0 0.0
    %106 = vmatpush1.msra.mxu0 0.0
    %107 = vmatprep.subr.mxu0 0.0
    %108 = vmatpush1.msra.mxu0 0.0
    %109 = vmatprep.subr.mxu0 0.0
    %110 = vmatpush1.msra.mxu0 0.0
    %111 = vmatprep.subr.mxu0 0.0
    %112 = vmatpush1.msra.mxu0 0.0
    %113 = vmatprep.subr.mxu0 0.0
    %114 = vmatpush1.msra.mxu0 0.0
    %115 = vmatprep.subr.mxu0 0.0
    %116 = vmatpush1.msra.mxu0 0.0
    %117 = vmatprep.subr.mxu0 0.0
    %118 = vmatpush1.msra.mxu0 0.0
    %119 = vmatprep.subr.mxu0 0.0
    %120 = vmatpush1.msra.mxu0 0.0
    %121 = vmatprep.subr.mxu0 0.0
    %122 = vmatpush1.msra.mxu0 0.0
    %123 = vmatprep.subr.mxu0 0.0
    %124 = vmatpush1.msra.mxu0 0.0
    %125 = vmatprep.subr.mxu0 0.0
    %126 = vmatpush1.msra.mxu0 0.0
    %127 = vmatprep.mubr.f32.mxu0 0.0
    %128 = vmatmul.mubr.f32.gmra.mrb[0].mxu0 %v58
    %v129 = vpop.f32.mrb[0].mxu0
    %v130 = vadd.f32 %v54, %v129
    %v131 = vpop.f32.mrb[0].mxu0
    %132 = vmatprep.mubr.f32.mxu0 0.0
    %133 = vmatmul.mubr.f32.gmra.mrb[0].mxu0 %v61
    %v134 = vpop.f32.mrb[0].mxu0
    %v135 = vadd.f32 %v54, %v134
    %v136 = vpop.f32.mrb[0].mxu0
    %137 = vdwg.mxu0
    %p138 = scmp.eq.s32.totalorder 0, 0
    // Predicated region
    $region22: #{tpu_custom_call.1} parent=1 // pred_check
      %p139 = pneg %p138
    $region23: #{tpu_custom_call.1} parent=1 // pred_check_branch
      %141 = sbr.rel (%p139) target = $region25
    $region24: #{tpu_custom_call.1} parent=1 // pred_region
      %vm142 = vcmask 7168
      %143 = vst.msk [vmem:[#allocation2] sm:$0xff] %vm142, -inf
      %144 = vst.msk [vmem:[#allocation2 + $0x8] sm:$0xff] %vm142, -inf
      %145 = vst.msk [vmem:[#allocation3] sm:$0xff] %vm142, 0.0
      %146 = vst.msk [vmem:[#allocation3 + $0x8] sm:$0xff] %vm142, 0.0
    $region25: #{tpu_custom_call.1} parent=1 // pred_fallthru
      _
    %v147 = vld [vmem:[#allocation2] sm:$0xff]
    %v148 = vld [vmem:[#allocation2 + $0x8] sm:$0xff]
    %149 = vmax.xlane.f32.xlu0 %v130
    %v150 = vpop.xlane.xlu0 %149
    %151 = vmax.xlane.f32.xlu0 %v135
    %v152 = vpop.xlane.xlu0 %151
    %v153 = vmax.f32 %v147, %v150
    %v154 = vmax.f32 %v148, %v152
    %v155 = vld [vmem:[#allocation3] sm:$0xff]
    %v156 = vld [vmem:[#allocation3 + $0x8] sm:$0xff]
    %v157 = vsub.f32 %v147, %v153
    %v158 = vsub.f32 %v148, %v154
    %v159 = vmul.f32 %v157, 1.442695
    %v160 = vpow.pop %v159
    %v161 = vmul.f32 %v158, 1.442695
    %v162 = vpow.pop %v161
    %v163 = vmul.f32 %v155, %v160
    %v164 = vmul.f32 %v156, %v162
    %166 = vset.pattern.permute.xlu0 0
    %167 = vperm.xlu0 %166, %v153
    %v168 = vpop.permute.xlu0 %167
    %171 = vset.pattern.permute.xlu0 0
    %172 = vperm.xlu0 %171, %v154
    %v173 = vpop.permute.xlu0 %172
    %v175 = vsub.f32 %v130, %v168
    %v176 = vsub.f32 %v135, %v173
    %v177 = vmul.f32 %v175, 1.442695
    %v178 = vpow.pop %v177
    %v179 = vmul.f32 %v176, 1.442695
    %v180 = vpow.pop %v179
    %181 = vadd.xlane.f32.xlu0 %v178
    %v182 = vpop.xlane.xlu0 %181
    %183 = vadd.xlane.f32.xlu0 %v180
    %v184 = vpop.xlane.xlu0 %183
    %v185 = vadd.f32 %v163, %v182
    %v186 = vadd.f32 %v164, %v184
    %vm187 = vcmask 7168
    %188 = vst.msk [vmem:[#allocation3] sm:$0xff] %vm187, %v185
    %189 = vst.msk [vmem:[#allocation3 + $0x8] sm:$0xff] %vm187, %v186
    %190 = vst.msk [vmem:[#allocation2] sm:$0xff] %vm187, %v153
    %191 = vst.msk [vmem:[#allocation2 + $0x8] sm:$0xff] %vm187, %v154
    %s192 = smul.u32 0, 128
    %s193 = sshra.s32 %s192, 7
    %s194 = sand.u32 %s192, 127
    %s195 = scalar_lea.vmem [#allocation9], %s193
    %196 = vst [vmem:[%s195] sm:$0xff] %v130
    %197 = vst [vmem:[%s195 + $0x8] sm:$0xff] %v135
    // Predicated region
    $region26: #{tpu_custom_call.1} parent=1 // pred_check
      %p198 = pneg %p138
    $region27: #{tpu_custom_call.1} parent=1 // pred_check_branch
      %200 = sbr.rel (%p198) target = $region29
    $region28: #{tpu_custom_call.1} parent=1 // pred_region
      %v201 = vld [vmem:[#allocation2] sm:$0xff]
      %v202 = vld [vmem:[#allocation2 + $0x8] sm:$0xff]
      %v203 = vld [vmem:[#allocation3] sm:$0xff]
      %v204 = vld [vmem:[#allocation3 + $0x8] sm:$0xff]
      %v205 = vlog2.pop %v203
      %v206 = vmul.f32 %v205, 0.6931472
      %v207 = vlog2.pop %v204
      %v208 = vmul.f32 %v207, 0.6931472
      %v209 = vadd.f32 %v201, %v206
      %v210 = vadd.f32 %v202, %v208
      %v211 = vld [vmem:[#allocation9] sm:$0xff]
      %v212 = vld [vmem:[#allocation9 + $0x8] sm:$0xff]
      %214 = vset.pattern.permute.xlu0 0
      %215 = vperm.xlu0 %214, %v209
      %v216 = vpop.permute.xlu0 %215
      %219 = vset.pattern.permute.xlu0 0
      %220 = vperm.xlu0 %219, %v210
      %v221 = vpop.permute.xlu0 %220
      %v223 = vsub.f32 %v211, %v216
      %v224 = vsub.f32 %v212, %v221
      %225 = vst [vmem:[#allocation9] sm:$0xff] %v223
      %226 = vst [vmem:[#allocation9 + $0x8] sm:$0xff] %v224
    $region29: #{tpu_custom_call.1} parent=1 // pred_fallthru
      _
    // Predicated region
    $region30: #{tpu_custom_call.1} parent=1 // pred_check
      _
    $region31: #{tpu_custom_call.1} parent=1 // pred_check_branch
      %228 = sbr.rel (0) target = $region33
    $region32: #{tpu_custom_call.1} parent=1 // pred_region
      %s230 = ssub.s32 256, 256
      %231 = vsyncadd [#allocation6], %s230
      %s232 = sshll.u32 [#allocation9], 4
      %s233 = int_to_ptr.vmem [resolvable:$true] %s232
      %238 = dma.vmem_to_hbm [thread:$0]  %s233, 256, %s3, [#allocation6], 128, 128, 8
    $region33: #{tpu_custom_call.1} parent=1 // pred_fallthru
      _
    // Predicated region
    $region34: #{tpu_custom_call.1} parent=1 // pred_check
      _
    $region35: #{tpu_custom_call.1} parent=1 // pred_check_branch
      %240 = sbr.rel (0) target = $region37
    $region36: #{tpu_custom_call.1} parent=1 // pred_region
      %241 = dma.done [#allocation6], 256
    $region37: #{tpu_custom_call.1} parent=1 // pred_fallthru
      _
    %242 = vsyncpa [#allocation5], 1
    %243 = vsyncpa [#allocation8], 1
    %244 = vsyncpa [#allocation6], 1

</llo_original>
